<compile_context>
chip_gen: v5e
topology: v5e:2x2
jax: 0.10.0
libtpu: 0.0.40
codegen_flags: <defaults>
</compile_context>

<pallas_src>
import math

import jax
import jax.numpy as jnp
from jax import lax
from jax.experimental import pallas as pl
from jax.experimental.pallas import tpu as pltpu


# --------------------------------------------------------------------------------------
# Kernel body
# --------------------------------------------------------------------------------------
def _attn_tile(q_ref, kt_ref, v_ref, mask_ref, lens_ref, o_ref,
               m_sc, l_sc, acc_sc, *,
               scale, kv_tile, len_k_true, len_k_padded, approx_recip):
    """One (batch, q-tile, kv-tile) step of online-softmax attention.
    mask_ref (dense int8 mask tile) and lens_ref (SMEM key-length prefetch) may be None."""
    b = pl.program_id(0)
    kv_idx = pl.program_id(2)

    @pl.when(kv_idx == 0)
    def _init():
        m_sc[...] = jnp.full_like(m_sc, -jnp.inf)
        l_sc[...] = jnp.zeros_like(l_sc)
        acc_sc[...] = jnp.zeros_like(acc_sc)

    # scores = q @ k^T : (tq, d) x (d, tk) on the MXU, f32 accumulation.  k arrives
    # pre-transposed, so the tile is lane-dense and no in-kernel transpose is needed.
    s = lax.dot_general(
        q_ref[...], kt_ref[...],
        dimension_numbers=(((1,), (0,)), ((), ())),
        preferred_element_type=jnp.float32,
    )                                                                 # (tq, tk) f32
    # Scale the f32 score tile (matches PyTorch matmul().mul(scale) exactly).
    s = s * jnp.float32(scale)

    if mask_ref is not None:
        # Exact masked_fill_(-1e9) semantics (fully-masked rows -> uniform softmax).
        s = jnp.where(mask_ref[...] != 0, jnp.float32(-1e9), s)

    needs_pad_mask = len_k_padded > len_k_true
    if (lens_ref is not None) or needs_pad_mask:
        col = kv_idx * kv_tile + lax.broadcasted_iota(jnp.int32, s.shape, 1)
    if lens_ref is not None:
        # Padding mask rebuilt from the per-batch key length in SMEM: no mask DMA at all.
        s = jnp.where(col >= lens_ref[b], jnp.float32(-1e9), s)
    if needs_pad_mask:
        # Structural zero padding of the key axis (length rounded up to a tile multiple):
        # exclude it entirely, even when every *real* key is user-masked.
        s = jnp.where(col >= len_k_true, jnp.float32(-1e30), s)

    # Online-softmax update; stats stay in f32.
    m_prev = m_sc[...]
    m_new = jnp.maximum(m_prev, jnp.max(s, axis=-1, keepdims=True))
    alpha = jnp.exp(m_prev - m_new)
    p = jnp.exp(s - m_new)                                            # (tq, tk) f32
    l_sc[...] = alpha * l_sc[...] + jnp.sum(p, axis=-1, keepdims=True)
    acc_sc[...] = alpha * acc_sc[...] + jnp.dot(
        p.astype(v_ref.dtype), v_ref[...], preferred_element_type=jnp.float32)
    m_sc[...] = m_new

    @pl.when(kv_idx == pl.num_programs(2) - 1)
    def _finalize():
        if approx_recip:
            inv = pl.reciprocal(l_sc[...], approx=True)   # EUP slot, ~free
        else:
            inv = 1.0 / l_sc[...]
        o_ref[...] = (acc_sc[...] * inv).astype(o_ref.dtype)


def _make_kernel(*, has_lens, has_mask, **kw):
    """Build a kernel with the exact positional signature Pallas will call."""
    if has_lens and has_mask:
        def kernel(lens_ref, q_ref, kt_ref, v_ref, mask_ref, o_ref, m, l, a):
            _attn_tile(q_ref, kt_ref, v_ref, mask_ref, lens_ref, o_ref, m, l, a, **kw)
    elif has_lens:
        def kernel(lens_ref, q_ref, kt_ref, v_ref, o_ref, m, l, a):
            _attn_tile(q_ref, kt_ref, v_ref, None, lens_ref, o_ref, m, l, a, **kw)
    elif has_mask:
        def kernel(q_ref, kt_ref, v_ref, mask_ref, o_ref, m, l, a):
            _attn_tile(q_ref, kt_ref, v_ref, mask_ref, None, o_ref, m, l, a, **kw)
    else:
        def kernel(q_ref, kt_ref, v_ref, o_ref, m, l, a):
            _attn_tile(q_ref, kt_ref, v_ref, None, None, o_ref, m, l, a, **kw)
    return kernel


# --------------------------------------------------------------------------------------
# Tiling helpers
# --------------------------------------------------------------------------------------
def _default_tiles():
    """Generation-aware default (q_tile, kv_tile)."""
    try:
        kind = jax.devices()[0].device_kind.lower()
    except Exception:
        return 256, 256
    if any(t in kind for t in ("v2", "v3", "v4", "v5 lite", "v5lite", "v5e")):
        return 128, 128          # 128x128 MXUs, lowest HBM BW: small, balanced tiles
    if "v6" in kind:
        return 256, 512          # amortize per-kv-step overhead (mask DMA already gone)
    return 256, 256              # v7x & unknown: 2 TCs, 64 MiB VMEM ceiling


def _tile_and_pad(n, preferred):
    """Pick a tile for an axis of extent n.  Returns (tile, padded_n) with tile | padded_n.
    Large non-divisible extents are padded to a multiple of 128 (masked in-kernel)
    instead of silently falling back to one giant full-extent block (VMEM safety)."""
    for t in (preferred, 512, 256, 128):
        if t <= n and n % t == 0:
            return t, n
    if n <= preferred:
        return n, n                         # single small full-extent block
    n_pad = ((n + 127) // 128) * 128
    for t in (preferred, 512, 256, 128):
        if t <= n_pad and n_pad % t == 0:
            return t, n_pad
    return 128, n_pad


# --------------------------------------------------------------------------------------
# Public wrapper
# --------------------------------------------------------------------------------------
def self_attention(q, k, v, att_mask=None, key_lengths=None, *,
                   q_tile=None, kv_tile=None, mxu_dtype=None,
                   approx_reciprocal=True, vmem_limit_bytes=None):
    """Scaled dot-product attention (eval mode of the PyTorch SelfAttention module).

    q: [bz, len_q, d_k], k: [bz, len_k, d_k], v: [bz, len_k, d_v]
    att_mask:    optional dense [bz, len_q, len_k] (bool/int; nonzero == masked).
    key_lengths: optional [bz] int32 valid-key counts -- the preferred way to express a
                 padding mask (no dense mask DMA at all).
    mxu_dtype:   e.g. jnp.bfloat16 to feed bf16-native MXUs (v6e/v7x) and halve q/k/v
                 HBM bytes; None keeps the input dtype (exact).
    Returns [bz, len_q, d_v] in q.dtype.
    """
    bz, len_q, d_k = q.shape
    _, len_k, d_v = v.shape
    scale = 1.0 / math.sqrt(d_k)

    dq_tile, dkv_tile = _default_tiles()
    q_tile = dq_tile if q_tile is None else q_tile
    kv_tile = dkv_tile if kv_tile is None else kv_tile

    tq, len_q_p = _tile_and_pad(len_q, q_tile)
    tk, len_k_p = _tile_and_pad(len_k, kv_tile)

    out_dtype = q.dtype
    compute_dtype = q.dtype if mxu_dtype is None else mxu_dtype

    qc = q.astype(compute_dtype)
    kc = k.astype(compute_dtype)
    vc = v.astype(compute_dtype)
    if len_q_p != len_q:
        qc = jnp.pad(qc, ((0, 0), (0, len_q_p - len_q), (0, 0)))
    if len_k_p != len_k:
        kc = jnp.pad(kc, ((0, 0), (0, len_k_p - len_k), (0, 0)))
        vc = jnp.pad(vc, ((0, 0), (0, len_k_p - len_k), (0, 0)))
    # Pre-transpose k so the in-kernel tile is (d_k, tk): lane-dense last dim.
    kt = jnp.swapaxes(kc, 1, 2)                               # [bz, d_k, len_k_p]

    has_mask = att_mask is not None
    has_lens = key_lengths is not None

    grid = (bz, len_q_p // tq, len_k_p // tk)

    # index_maps take (*grid_indices, *scalar_prefetch_refs); absorb the latter with *_.
    q_spec = pl.BlockSpec((None, tq, d_k), lambda b, qi, ki, *_: (b, qi, 0))
    kt_spec = pl.BlockSpec((None, d_k, tk), lambda b, qi, ki, *_: (b, 0, ki))
    v_spec = pl.BlockSpec((None, tk, d_v), lambda b, qi, ki, *_: (b, ki, 0))
    out_spec = pl.BlockSpec((None, tq, d_v), lambda b, qi, ki, *_: (b, qi, 0))
    # NOTE: on v5e with exposed kv-axis DMA, pipeline_mode=pl.Buffered(3) on kt/v specs
    # is a few-percent lever; left at the default double-buffering here.

    in_specs = [q_spec, kt_spec, v_spec]
    operands = [qc, kt, vc]
    if has_mask:
        # Dense fallback: int8 {0,1}; prefer key_lengths for padding masks.
        m8 = (att_mask != 0).astype(jnp.int8)
        if len_q_p != len_q or len_k_p != len_k:
            m8 = jnp.pad(m8, ((0, 0), (0, len_q_p - len_q), (0, len_k_p - len_k)))
        in_specs.append(pl.BlockSpec((None, tq, tk), lambda b, qi, ki, *_: (b, qi, ki)))
        operands.append(m8)

    prefetch = []
    if has_lens:
        prefetch.append(jnp.asarray(key_lengths, dtype=jnp.int32))

    kernel = _make_kernel(
        has_lens=has_lens, has_mask=has_mask, scale=scale, kv_tile=tk,
        len_k_true=len_k, len_k_padded=len_k_p, approx_recip=approx_reciprocal)

    scratch_shapes = [
        pltpu.VMEM((tq, 1), jnp.float32),     # running max  m
        pltpu.VMEM((tq, 1), jnp.float32),     # running sum  l
        pltpu.VMEM((tq, d_v), jnp.float32),   # running numerator acc
    ]

    compiler_kwargs = dict(dimension_semantics=("parallel", "parallel", "arbitrary"))
    if vmem_limit_bytes is not None:
        compiler_kwargs["vmem_limit_bytes"] = vmem_limit_bytes

    out = pl.pallas_call(
        kernel,
        out_shape=jax.ShapeDtypeStruct((bz, len_q_p, d_v), out_dtype),
        grid_spec=pltpu.PrefetchScalarGridSpec(
            num_scalar_prefetch=len(prefetch),
            grid=grid,
            in_specs=in_specs,
            out_specs=out_spec,
            scratch_shapes=scratch_shapes,
        ),
        compiler_params=pltpu.CompilerParams(**compiler_kwargs),
    )(*prefetch, *operands)

    if len_q_p != len_q:
        out = out[:, :len_q, :]
    return out


# --------------------------------------------------------------------------------------
# Pure-JAX reference (mirrors the PyTorch forward in eval mode)
# --------------------------------------------------------------------------------------
def _reference(q, k, v, att_mask=None):
    scale = 1.0 / math.sqrt(q.shape[-1])
    scores = jnp.einsum("bqd,bkd->bqk",
                        q.astype(jnp.float32), k.astype(jnp.float32)) * scale
    if att_mask is not None:
        scores = jnp.where(att_mask, jnp.float32(-1e9), scores)
    p = jax.nn.softmax(scores, axis=-1)
    return jnp.einsum("bqk,bkd->bqd", p, v.astype(jnp.float32))


if __name__ == "__main__":
    key = jax.random.PRNGKey(0)
    kq, kk, kv, km = jax.random.split(key, 4)

    # Small module-like shapes (single head, d_k = d_v = 32).
    bz, len_q, len_k, d_k, d_v = 2, 8, 8, 32, 32
    q = jax.random.normal(kq, (bz, len_q, d_k), dtype=jnp.float32)
    k = jax.random.normal(kk, (bz, len_k, d_k), dtype=jnp.float32)
    v = jax.random.normal(kv, (bz, len_k, d_v), dtype=jnp.float32)
    att_mask = jax.random.bernoulli(km, p=0.2, shape=(bz, len_q, len_k))

    # 1) dense boolean mask (int8 in-kernel, masked_fill semantics) ----------------
    out = jax.block_until_ready(self_attention(q, k, v, att_mask=att_mask))
    ref = _reference(q, k, v, att_mask)
    assert out.shape == (bz, len_q, d_v)
    assert jnp.allclose(out, ref, atol=2e-3, rtol=2e-3), "dense-mask mismatch"

    # 2) no mask (no mask traffic, separate kernel variant) ------------------------
    out_nm = jax.block_until_ready(self_attention(q, k, v))
    ref_nm = _reference(q, k, v)
    assert jnp.allclose(out_nm, ref_nm, atol=2e-3, rtol=2e-3), "no-mask mismatch"

    # 3) padding mask via per-batch key lengths (scalar prefetch; no mask DMA) -----
    lens = jnp.array([5, 8], dtype=jnp.int32)
    pad_mask = jnp.broadcast_to(
        jnp.arange(len_k)[None, None, :] >= lens[:, None, None], (bz, len_q, len_k))
    out_kl = jax.block_until_ready(self_attention(q, k, v, key_lengths=lens))
    ref_kl = _reference(q, k, v, pad_mask)
    assert jnp.allclose(out_kl, ref_kl, atol=2e-3, rtol=2e-3), "key-length mismatch"

    # 4) non-128-divisible length: exercises in-wrapper padding + multi-kv-tile
    #    online softmax + in-kernel structural masking ------------------------------
    k2q, k2k, k2v = jax.random.split(jax.random.PRNGKey(1), 3)
    bz2, len2, d2 = 2, 200, 64
    q2 = jax.random.normal(k2q, (bz2, len2, d2), dtype=jnp.float32)
    k2 = jax.random.normal(k2k, (bz2, len2, d2), dtype=jnp.float32)
    v2 = jax.random.normal(k2v, (bz2, len2, d2), dtype=jnp.float32)
    lens2 = jnp.array([137, 200], dtype=jnp.int32)
    pm2 = jnp.broadcast_to(
        jnp.arange(len2)[None, None, :] >= lens2[:, None, None], (bz2, len2, len2))
    out2 = jax.block_until_ready(
        self_attention(q2, k2, v2, key_lengths=lens2, q_tile=128, kv_tile=128))
    ref2 = _reference(q2, k2, v2, pm2)
    assert out2.shape == (bz2, len2, d2)
    assert jnp.allclose(out2, ref2, atol=2e-3, rtol=2e-3), "padded/tiled mismatch"

    # 5) dense mask + bf16 MXU operands (halved q/k/v HBM bytes; bf16-native MXU) ---
    mask2 = jax.random.bernoulli(jax.random.PRNGKey(2), p=0.15, shape=(bz2, len2, len2))
    out3 = jax.block_until_ready(
        self_attention(q2, k2, v2, att_mask=mask2, q_tile=128, kv_tile=128,
                       mxu_dtype=jnp.bfloat16))
    ref3 = _reference(q2.astype(jnp.bfloat16).astype(jnp.float32),
                      k2.astype(jnp.bfloat16).astype(jnp.float32),
                      v2.astype(jnp.bfloat16).astype(jnp.float32), mask2)
    assert jnp.allclose(out3, ref3, atol=1e-1, rtol=1e-1), "bf16-MXU mismatch"

    print("KERNEL_OK")
</pallas_src>

<mosaic_0001>
module attributes {stable_mosaic.version = 11 : i64} {
  func.func @kernel(%arg0: i32, %arg1: i32, %arg2: i32, %arg3: memref<1x8x32xf32, #tpu.memory_space<vmem>>, %arg4: memref<1x32x8xf32, #tpu.memory_space<vmem>>, %arg5: memref<1x8x32xf32, #tpu.memory_space<vmem>>, %arg6: memref<1x8x8xi8, #tpu.memory_space<vmem>>, %arg7: memref<1x8x32xf32, #tpu.memory_space<vmem>>, %arg8: memref<8x1xf32, #tpu.memory_space<vmem>>, %arg9: memref<8x1xf32, #tpu.memory_space<vmem>>, %arg10: memref<8x32xf32, #tpu.memory_space<vmem>>) attributes {dimension_semantics = [#tpu.dimension_semantics<parallel>, #tpu.dimension_semantics<parallel>, #tpu.dimension_semantics<arbitrary>], iteration_bounds = array<i64: 2, 1, 1>, scalar_prefetch = 0 : i64, scratch_operands = 3 : i64, tpu.core_type = #tpu.core_type<tc>, window_params = [{transform_indices = @transform_0, window_bounds = array<i64: 1, 8, 32>}, {transform_indices = @transform_1, window_bounds = array<i64: 1, 32, 8>}, {transform_indices = @transform_2, window_bounds = array<i64: 1, 8, 32>}, {transform_indices = @transform_3, window_bounds = array<i64: 1, 8, 8>}, {transform_indices = @transform_4, window_bounds = array<i64: 1, 8, 32>}]} {
    %c0_i32 = arith.constant 0 : i32
    %0 = arith.cmpi eq, %arg2, %c0_i32 : i32
    %1 = arith.extui %0 : i1 to i32
    %c0_i32_0 = arith.constant 0 : i32
    %2 = arith.cmpi ne, %1, %c0_i32_0 : i32
    scf.if %2 {
      %cst_31 = arith.constant 0xFF800000 : f32
      %43 = vector.broadcast %cst_31 : f32 to vector<8x1xf32>
      %c0_32 = arith.constant 0 : index
      %c0_33 = arith.constant 0 : index
      %44 = vector.load %arg8[%c0_32, %c0_33] : memref<8x1xf32, #tpu.memory_space<vmem>>, vector<8x1xf32>
      tpu.vector_store %arg8[%c0_32, %c0_33], %43 {strides = array<i32>} : memref<8x1xf32, #tpu.memory_space<vmem>>, vector<8x1xf32>,
      %cst_34 = arith.constant 0.000000e+00 : f32
      %45 = vector.broadcast %cst_34 : f32 to vector<8x1xf32>
      %c0_35 = arith.constant 0 : index
      %c0_36 = arith.constant 0 : index
      %46 = vector.load %arg9[%c0_35, %c0_36] : memref<8x1xf32, #tpu.memory_space<vmem>>, vector<8x1xf32>
      tpu.vector_store %arg9[%c0_35, %c0_36], %45 {strides = array<i32>} : memref<8x1xf32, #tpu.memory_space<vmem>>, vector<8x1xf32>,
      %cst_37 = arith.constant 0.000000e+00 : f32
      %47 = vector.broadcast %cst_37 : f32 to vector<8x32xf32>
      %c0_38 = arith.constant 0 : index
      %c0_39 = arith.constant 0 : index
      %48 = vector.load %arg10[%c0_38, %c0_39] : memref<8x32xf32, #tpu.memory_space<vmem>>, vector<8x32xf32>
      tpu.vector_store %arg10[%c0_38, %c0_39], %47 {strides = array<i32>} : memref<8x32xf32, #tpu.memory_space<vmem>>, vector<8x32xf32>,
    } else {
    }
    %c0 = arith.constant 0 : index
    %c0_1 = arith.constant 0 : index
    %c0_2 = arith.constant 0 : index
    %3 = vector.load %arg3[%c0, %c0_1, %c0_2] : memref<1x8x32xf32, #tpu.memory_space<vmem>>, vector<1x8x32xf32>
    %4 = vector.shape_cast %3 : vector<1x8x32xf32> to vector<8x32xf32>
    %c0_3 = arith.constant 0 : index
    %c0_4 = arith.constant 0 : index
    %c0_5 = arith.constant 0 : index
    %5 = vector.load %arg4[%c0_3, %c0_4, %c0_5] : memref<1x32x8xf32, #tpu.memory_space<vmem>>, vector<1x32x8xf32>
    %6 = vector.shape_cast %5 : vector<1x32x8xf32> to vector<32x8xf32>
    %cst = arith.constant dense<0.000000e+00> : vector<8x8xf32>
    %7 = tpu.matmul %4, %6, %cst {dimension_numbers = #tpu.dot_dimension_numbers<[1], [0], [0], [1], [0, 0, 1, 1], [], []>} : vector<8x32xf32>, vector<32x8xf32>, vector<8x8xf32> -> vector<8x8xf32>
    %cst_6 = arith.constant 0.176776692 : f32
    %8 = vector.broadcast %cst_6 : f32 to vector<8x8xf32>
    %9 = arith.mulf %7, %8 : vector<8x8xf32>
    %c0_7 = arith.constant 0 : index
    %c0_8 = arith.constant 0 : index
    %c0_9 = arith.constant 0 : index
    %10 = vector.load %arg6[%c0_7, %c0_8, %c0_9] : memref<1x8x8xi8, #tpu.memory_space<vmem>>, vector<1x8x8xi8>
    %11 = vector.shape_cast %10 : vector<1x8x8xi8> to vector<8x8xi8>
    %c0_i8 = arith.constant 0 : i8
    %12 = vector.broadcast %c0_i8 : i8 to vector<8x8xi8>
    %13 = arith.cmpi ne, %11, %12 : vector<8x8xi8>
    %cst_10 = arith.constant -1.000000e+09 : f32
    %14 = vector.broadcast %cst_10 : f32 to vector<8x8xf32>
    %15 = arith.select %13, %14, %9 : vector<8x8xi1>, vector<8x8xf32>
    %c0_11 = arith.constant 0 : index
    %c0_12 = arith.constant 0 : index
    %16 = vector.load %arg8[%c0_11, %c0_12] : memref<8x1xf32, #tpu.memory_space<vmem>>, vector<8x1xf32>
    %cst_13 = arith.constant dense<0xFF800000> : vector<8xf32>
    %17 = vector.multi_reduction <maximumf>, %15, %cst_13 [1] : vector<8x8xf32> to vector<8xf32>
    %18 = vector.shape_cast %17 : vector<8xf32> to vector<8x1xf32>
    %19 = arith.maximumf %16, %18 : vector<8x1xf32>
    %20 = arith.subf %16, %19 : vector<8x1xf32>
    %21 = math.exp %20 : vector<8x1xf32>
    %22 = vector.broadcast %19 : vector<8x1xf32> to vector<8x8xf32>
    %23 = arith.subf %15, %22 : vector<8x8xf32>
    %24 = math.exp %23 : vector<8x8xf32>
    %c0_14 = arith.constant 0 : index
    %c0_15 = arith.constant 0 : index
    %25 = vector.load %arg9[%c0_14, %c0_15] : memref<8x1xf32, #tpu.memory_space<vmem>>, vector<8x1xf32>
    %26 = arith.mulf %21, %25 : vector<8x1xf32>
    %cst_16 = arith.constant dense<0.000000e+00> : vector<8xf32>
    %27 = vector.multi_reduction <add>, %24, %cst_16 [1] : vector<8x8xf32> to vector<8xf32>
    %28 = vector.shape_cast %27 : vector<8xf32> to vector<8x1xf32>
    %29 = arith.addf %26, %28 : vector<8x1xf32>
    %c0_17 = arith.constant 0 : index
    %c0_18 = arith.constant 0 : index
    %30 = vector.load %arg9[%c0_17, %c0_18] : memref<8x1xf32, #tpu.memory_space<vmem>>, vector<8x1xf32>
    tpu.vector_store %arg9[%c0_17, %c0_18], %29 {strides = array<i32>} : memref<8x1xf32, #tpu.memory_space<vmem>>, vector<8x1xf32>,
    %c0_19 = arith.constant 0 : index
    %c0_20 = arith.constant 0 : index
    %31 = vector.load %arg10[%c0_19, %c0_20] : memref<8x32xf32, #tpu.memory_space<vmem>>, vector<8x32xf32>
    %32 = vector.broadcast %21 : vector<8x1xf32> to vector<8x32xf32>
    %33 = arith.mulf %32, %31 : vector<8x32xf32>
    %c0_21 = arith.constant 0 : index
    %c0_22 = arith.constant 0 : index
    %c0_23 = arith.constant 0 : index
    %34 = vector.load %arg5[%c0_21, %c0_22, %c0_23] : memref<1x8x32xf32, #tpu.memory_space<vmem>>, vector<1x8x32xf32>
    %35 = vector.shape_cast %34 : vector<1x8x32xf32> to vector<8x32xf32>
    %cst_24 = arith.constant dense<0.000000e+00> : vector<8x32xf32>
    %36 = tpu.matmul %24, %35, %cst_24 {dimension_numbers = #tpu.dot_dimension_numbers<[1], [0], [0], [1], [0, 0, 1, 1], [], []>} : vector<8x8xf32>, vector<8x32xf32>, vector<8x32xf32> -> vector<8x32xf32>
    %37 = arith.addf %33, %36 : vector<8x32xf32>
    %c0_25 = arith.constant 0 : index
    %c0_26 = arith.constant 0 : index
    %38 = vector.load %arg10[%c0_25, %c0_26] : memref<8x32xf32, #tpu.memory_space<vmem>>, vector<8x32xf32>
    tpu.vector_store %arg10[%c0_25, %c0_26], %37 {strides = array<i32>} : memref<8x32xf32, #tpu.memory_space<vmem>>, vector<8x32xf32>,
    %c0_27 = arith.constant 0 : index
    %c0_28 = arith.constant 0 : index
    %39 = vector.load %arg8[%c0_27, %c0_28] : memref<8x1xf32, #tpu.memory_space<vmem>>, vector<8x1xf32>
    tpu.vector_store %arg8[%c0_27, %c0_28], %19 {strides = array<i32>} : memref<8x1xf32, #tpu.memory_space<vmem>>, vector<8x1xf32>,
    %c0_i32_29 = arith.constant 0 : i32
    %40 = arith.cmpi eq, %arg2, %c0_i32_29 : i32
    %41 = arith.extui %40 : i1 to i32
    %c0_i32_30 = arith.constant 0 : i32
    %42 = arith.cmpi ne, %41, %c0_i32_30 : i32
    scf.if %42 {
      %c0_31 = arith.constant 0 : index
      %c0_32 = arith.constant 0 : index
      %43 = vector.load %arg9[%c0_31, %c0_32] : memref<8x1xf32, #tpu.memory_space<vmem>>, vector<8x1xf32>
      %44 = tpu.reciprocal %43 {approx = true} : vector<8x1xf32> -> vector<8x1xf32>
      %c0_33 = arith.constant 0 : index
      %c0_34 = arith.constant 0 : index
      %45 = vector.load %arg10[%c0_33, %c0_34] : memref<8x32xf32, #tpu.memory_space<vmem>>, vector<8x32xf32>
      %46 = vector.broadcast %44 : vector<8x1xf32> to vector<8x32xf32>
      %47 = arith.mulf %45, %46 : vector<8x32xf32>
      %c0_35 = arith.constant 0 : index
      %c0_36 = arith.constant 0 : index
      %c0_37 = arith.constant 0 : index
      %48 = vector.load %arg7[%c0_35, %c0_36, %c0_37] : memref<1x8x32xf32, #tpu.memory_space<vmem>>, vector<1x8x32xf32>
      %49 = vector.shape_cast %48 : vector<1x8x32xf32> to vector<8x32xf32>
      %50 = vector.shape_cast %47 : vector<8x32xf32> to vector<1x8x32xf32>
      tpu.vector_store %arg7[%c0_35, %c0_36, %c0_37], %50 {strides = array<i32>} : memref<1x8x32xf32, #tpu.memory_space<vmem>>, vector<1x8x32xf32>,
    } else {
    }
    return
  }
  func.func @transform_0(%arg0: i32, %arg1: i32, %arg2: i32) -> (i32, i32, i32) {
    %c0_i32 = arith.constant 0 : i32
    %c0_i32_0 = arith.constant 0 : i32
    return %arg0, %arg1, %c0_i32 : i32, i32, i32
  }
  func.func @transform_1(%arg0: i32, %arg1: i32, %arg2: i32) -> (i32, i32, i32) {
    %c0_i32 = arith.constant 0 : i32
    %c0_i32_0 = arith.constant 0 : i32
    return %arg0, %c0_i32, %arg2 : i32, i32, i32
  }
  func.func @transform_2(%arg0: i32, %arg1: i32, %arg2: i32) -> (i32, i32, i32) {
    %c0_i32 = arith.constant 0 : i32
    %c0_i32_0 = arith.constant 0 : i32
    return %arg0, %arg2, %c0_i32 : i32, i32, i32
  }
  func.func @transform_3(%arg0: i32, %arg1: i32, %arg2: i32) -> (i32, i32, i32) {
    %c0_i32 = arith.constant 0 : i32
    return %arg0, %arg1, %arg2 : i32, i32, i32
  }
  func.func @transform_4(%arg0: i32, %arg1: i32, %arg2: i32) -> (i32, i32, i32) {
    %c0_i32 = arith.constant 0 : i32
    %c0_i32_0 = arith.constant 0 : i32
    return %arg0, %arg1, %c0_i32 : i32, i32, i32
  }
}

</mosaic_0001>

<llo_original>
// kernel: tpu_custom_call.1
$region0: #{tpu_custom_call.1}
  #allocation0 [shape = 'u32[]', space=smem, size = 0x4, offset = 0x4, fixed_abs, tag = 'smem constant byte address 0x4 - core index']
  #allocation1 [shape = 'u32[72,128]{1,0:T(1,128)}', space=vmem, size = 0x9000, scoped, tag = 'internal scratch']
  #allocation2 [shape = 'f32[8,1]{1,0:T(8,128)}', space=vmem, size = 0x1000, scoped, tag = 'scratch operand']
  #allocation3 [shape = 'f32[8,1]{1,0:T(8,128)}', space=vmem, size = 0x1000, scoped, tag = 'scratch operand']
  #allocation4 [shape = 'f32[8,32]{1,0:T(8,128)}', space=vmem, size = 0x1000, scoped, tag = 'scratch operand']
  %s0 = inlined_call_operand.vmem [shape: f32[2,8,32], index: 0, kind: input, shape index: {}]
  %s1 = inlined_call_operand.vmem [shape: f32[2,32,8], index: 1, kind: input, shape index: {}]
  %s2 = inlined_call_operand.vmem [shape: f32[2,8,32], index: 2, kind: input, shape index: {}]
  %s3 = inlined_call_operand.vmem [shape: s8[2,8,8], index: 3, kind: input, shape index: {}]
  %s4 = inlined_call_operand.hbm [shape: f32[2,8,32], index: 4, kind: output, shape index: {}]
  %s5 = sld [smem:[#allocation0]]
  $region57: #{tpu_custom_call.1} parent=0
    _
  %s7 = ssub.s32 1, %s5
  %s8 = scalar_select 0, %s7, %s5
  $region1: #{tpu_custom_call.1} parent=0
    #allocation5 [shape = 'u8[8192]{0}', space=vmem, size = 0x2000, scoped, tag = 'output window, operand 0']
    #allocation6 [shape = 's32[2]{0}', space=sflag, size = 0x8, scoped, tag = 'scoped memory for tpu_custom_call.1']
    %9 = vsyncpa [#allocation6], 0
    %s10 = scalar_lea.sflag [#allocation6], 1
    %11 = vsyncpa %s10, 0
    loop: start=0, step=1, limit=4
    $region2: #{tpu_custom_call.1} parent=1 // loop_pre_header
      _
    $region3: #{tpu_custom_call.1} parent=1 // loop_header
      %s13 = sphi 0, %s17
      %p14 = scmp.ge.s32.totalorder %s13, 4
      %s20 = sphi 0, %s39
      %s21 = sphi 0, %s35
      %s22 = sphi 0, %s31
      %s23 = sphi 0, %s20
      %s24 = sphi 0, %s21
      %s25 = sphi 0, %s22
      %s26 = sphi 0, %s23
      %s27 = sphi 0, %s24
      %s28 = sphi 0, %s25
      %s44 = sphi 0, %s46
      %s47 = sphi 0, %s44
      %s48 = sphi 0, %s47
      %s64 = sphi 0, %s48
      %s72 = sphi 0, %s74
      %s75 = sphi 0, %s72
      %s76 = sphi 0, %s75
      %s92 = sphi 0, %s76
      %s100 = sphi 0, %s102
      %s103 = sphi 0, %s100
      %s104 = sphi 0, %s103
      %s120 = sphi 0, %s104
      %s130 = sphi 0, %s132
      %s133 = sphi 0, %s130
      %s134 = sphi 0, %s133
      %s150 = sphi 0, %s134
      %s158 = sphi 0, %s160
      %s161 = sphi 0, %s158
      %s162 = sphi 0, %s161
      %s178 = sphi 0, %s162
    $region4: #{tpu_custom_call.1} parent=1 // loop_header_branch
      %16 = sbr.rel (%p14) target = $region8
    $region5: #{tpu_custom_call.1} parent=1 // loop_body
      %s18 = ssub.s32 %s13, 1
      %s19 = ssub.s32 %s13, 2
      %s29 = sadd.s32 1, %s22
      %p30 = scmp.ge.s32.totalorder %s29, 1
      %s31 = scalar_select %p30, 0, %s29
      %s32 = sadd.s32 1, %s21
      %s33 = scalar_select %p30, %s32, %s21
      %p34 = scmp.ge.s32.totalorder %s33, 1
      %s35 = scalar_select %p34, 0, %s33
      %s36 = sadd.s32 1, %s20
      %s37 = scalar_select %p34, %s36, %s20
      %p38 = scmp.ge.s32.totalorder %s37, 2
      %s39 = scalar_select %p38, 0, %s37
      %s40 = ssub.s32 %s20, %s39
      %s41 = ssub.s32 %s21, %s35
      %s42 = sor.u32 %s40, %s41
      %p43 = scmp.eq.s32.totalorder %s42, 0
      %s45 = sadd.s32 %s44, 1
      %s46 = scalar_select %p43, %s44, %s45
      %p49 = pneg %p43
      %p50 = scmp.eq.s32.totalorder %s13, 1
      %p51 = por %p49, %p50
      %p52 = scmp.ne.s32.totalorder %s44, %s47
      %p53 = scmp.eq.s32.totalorder %s13, 0
      %p54 = por %p52, %p53
      %p55 = scmp.ne.s32.totalorder %s44, %s47
      %p56 = scmp.eq.s32.totalorder %s18, 1
      %p57 = por %p55, %p56
      %p58 = scmp.ne.s32.totalorder %s47, %s48
      %p59 = scmp.eq.s32.totalorder %s18, 0
      %p60 = por %p58, %p59
      %p61 = scmp.ne.s32.totalorder %s47, %s48
      %p62 = scmp.eq.s32.totalorder %s19, 1
      %p63 = por %p61, %p62
      %p65 = scmp.ne.s32.totalorder %s48, %s64
      %p66 = scmp.eq.s32.totalorder %s19, 0
      %p67 = por %p65, %p66
      %s68 = ssub.s32 %s20, %s39
      %s69 = ssub.s32 %s22, %s31
      %s70 = sor.u32 %s68, %s69
      %p71 = scmp.eq.s32.totalorder %s70, 0
      %s73 = sadd.s32 %s72, 1
      %s74 = scalar_select %p71, %s72, %s73
      %p77 = pneg %p71
      %p78 = scmp.eq.s32.totalorder %s13, 1
      %p79 = por %p77, %p78
      %p80 = scmp.ne.s32.totalorder %s72, %s75
      %p81 = scmp.eq.s32.totalorder %s13, 0
      %p82 = por %p80, %p81
      %p83 = scmp.ne.s32.totalorder %s72, %s75
      %p84 = scmp.eq.s32.totalorder %s18, 1
      %p85 = por %p83, %p84
      %p86 = scmp.ne.s32.totalorder %s75, %s76
      %p87 = scmp.eq.s32.totalorder %s18, 0
      %p88 = por %p86, %p87
      %p89 = scmp.ne.s32.totalorder %s75, %s76
      %p90 = scmp.eq.s32.totalorder %s19, 1
      %p91 = por %p89, %p90
      %p93 = scmp.ne.s32.totalorder %s76, %s92
      %p94 = scmp.eq.s32.totalorder %s19, 0
      %p95 = por %p93, %p94
      %s96 = ssub.s32 %s20, %s39
      %s97 = ssub.s32 %s22, %s31
      %s98 = sor.u32 %s96, %s97
      %p99 = scmp.eq.s32.totalorder %s98, 0
      %s101 = sadd.s32 %s100, 1
      %s102 = scalar_select %p99, %s100, %s101
      %p105 = pneg %p99
      %p106 = scmp.eq.s32.totalorder %s13, 1
      %p107 = por %p105, %p106
      %p108 = scmp.ne.s32.totalorder %s100, %s103
      %p109 = scmp.eq.s32.totalorder %s13, 0
      %p110 = por %p108, %p109
      %p111 = scmp.ne.s32.totalorder %s100, %s103
      %p112 = scmp.eq.s32.totalorder %s18, 1
      %p113 = por %p111, %p112
      %p114 = scmp.ne.s32.totalorder %s103, %s104
      %p115 = scmp.eq.s32.totalorder %s18, 0
      %p116 = por %p114, %p115
      %p117 = scmp.ne.s32.totalorder %s103, %s104
      %p118 = scmp.eq.s32.totalorder %s19, 1
      %p119 = por %p117, %p118
      %p121 = scmp.ne.s32.totalorder %s104, %s120
      %p122 = scmp.eq.s32.totalorder %s19, 0
      %p123 = por %p121, %p122
      %s124 = ssub.s32 %s20, %s39
      %s125 = ssub.s32 %s21, %s35
      %s126 = sor.u32 %s124, %s125
      %s127 = ssub.s32 %s22, %s31
      %s128 = sor.u32 %s126, %s127
      %p129 = scmp.eq.s32.totalorder %s128, 0
      %s131 = sadd.s32 %s130, 1
      %s132 = scalar_select %p129, %s130, %s131
      %p135 = pneg %p129
      %p136 = scmp.eq.s32.totalorder %s13, 1
      %p137 = por %p135, %p136
      %p138 = scmp.ne.s32.totalorder %s130, %s133
      %p139 = scmp.eq.s32.totalorder %s13, 0
      %p140 = por %p138, %p139
      %p141 = scmp.ne.s32.totalorder %s130, %s133
      %p142 = scmp.eq.s32.totalorder %s18, 1
      %p143 = por %p141, %p142
      %p144 = scmp.ne.s32.totalorder %s133, %s134
      %p145 = scmp.eq.s32.totalorder %s18, 0
      %p146 = por %p144, %p145
      %p147 = scmp.ne.s32.totalorder %s133, %s134
      %p148 = scmp.eq.s32.totalorder %s19, 1
      %p149 = por %p147, %p148
      %p151 = scmp.ne.s32.totalorder %s134, %s150
      %p152 = scmp.eq.s32.totalorder %s19, 0
      %p153 = por %p151, %p152
      %s154 = ssub.s32 %s20, %s39
      %s155 = ssub.s32 %s21, %s35
      %s156 = sor.u32 %s154, %s155
      %p157 = scmp.eq.s32.totalorder %s156, 0
      %s159 = sadd.s32 %s158, 1
      %s160 = scalar_select %p157, %s158, %s159
      %p163 = pneg %p157
      %p164 = scmp.eq.s32.totalorder %s13, 1
      %p165 = por %p163, %p164
      %p166 = scmp.ne.s32.totalorder %s158, %s161
      %p167 = scmp.eq.s32.totalorder %s13, 0
      %p168 = por %p166, %p167
      %p169 = scmp.ne.s32.totalorder %s158, %s161
      %p170 = scmp.eq.s32.totalorder %s18, 1
      %p171 = por %p169, %p170
      %p172 = scmp.ne.s32.totalorder %s161, %s162
      %p173 = scmp.eq.s32.totalorder %s18, 0
      %p174 = por %p172, %p173
      %p175 = scmp.ne.s32.totalorder %s161, %s162
      %p176 = scmp.eq.s32.totalorder %s19, 1
      %p177 = por %p175, %p176
      %p179 = scmp.ne.s32.totalorder %s162, %s178
      %p180 = scmp.eq.s32.totalorder %s19, 0
      %p181 = por %p179, %p180
      %p182 = scmp.le.s32.totalorder 1, %s13
      %p183 = scmp.lt.s32.totalorder %s13, 3
      %p184 = pnand %p182, %p183
      %p185 = pneg %p184
      // Predicated region
      $region9: #{tpu_custom_call.1} parent=5 // pred_check
        _
      $region10: #{tpu_custom_call.1} parent=5 // pred_check_branch
        %187 = sbr.rel (%p184) target = $region12
      $region11: #{tpu_custom_call.1} parent=5 // pred_region
        %s188 = ssub.s32 %s13, 1
      $region12: #{tpu_custom_call.1} parent=5 // pred_fallthru
        _
      %p189 = scmp.lt.s32.totalorder %s13, 2
      // Predicated region
      $region13: #{tpu_custom_call.1} parent=5 // pred_check
        %p190 = pneg %p189
      $region14: #{tpu_custom_call.1} parent=5 // pred_check_branch
        %192 = sbr.rel (%p190) target = $region16
      $region15: #{tpu_custom_call.1} parent=5 // pred_region
        // Predicated region
        $region17: #{tpu_custom_call.1} parent=15 // pred_check
          %p193 = pneg %p54
        $region18: #{tpu_custom_call.1} parent=15 // pred_check_branch
          %195 = sbr.rel (%p193) target = $region20
        $region19: #{tpu_custom_call.1} parent=15 // pred_region
          %p196 = scmp.lt.s32.totalorder %s20, 1
          %s197 = scalar_select %p196, %s20, 1
          %p198 = scmp.lt.s32.totalorder %s21, 0
          %s199 = scalar_select %p198, %s21, 0
          %s200 = sadd.s32 %s199, %s197
          %s201 = smul.addr %s200, 8
          %s202 = scalar_lea.vmem %s0, %s201
        $region20: #{tpu_custom_call.1} parent=15 // pred_fallthru
          _
        // Predicated region
        $region21: #{tpu_custom_call.1} parent=15 // pred_check
          %p203 = pneg %p82
        $region22: #{tpu_custom_call.1} parent=15 // pred_check_branch
          %205 = sbr.rel (%p203) target = $region24
        $region23: #{tpu_custom_call.1} parent=15 // pred_region
          %p206 = scmp.lt.s32.totalorder %s20, 1
          %s207 = scalar_select %p206, %s20, 1
          %p208 = scmp.lt.s32.totalorder %s22, 0
          %s209 = scalar_select %p208, %s22, 0
          %s210 = smul.addr %s207, 4
          %s211 = sadd.s32 %s209, %s210
          %s212 = smul.addr %s211, 8
          %s213 = scalar_lea.vmem %s1, %s212
        $region24: #{tpu_custom_call.1} parent=15 // pred_fallthru
          _
        // Predicated region
        $region25: #{tpu_custom_call.1} parent=15 // pred_check
          %p214 = pneg %p110
        $region26: #{tpu_custom_call.1} parent=15 // pred_check_branch
          %216 = sbr.rel (%p214) target = $region28
        $region27: #{tpu_custom_call.1} parent=15 // pred_region
          %p217 = scmp.lt.s32.totalorder %s20, 1
          %s218 = scalar_select %p217, %s20, 1
          %p219 = scmp.lt.s32.totalorder %s22, 0
          %s220 = scalar_select %p219, %s22, 0
          %s221 = sadd.s32 %s220, %s218
          %s222 = smul.addr %s221, 8
          %s223 = scalar_lea.vmem %s2, %s222
        $region28: #{tpu_custom_call.1} parent=15 // pred_fallthru
          _
        // Predicated region
        $region29: #{tpu_custom_call.1} parent=15 // pred_check
          %p224 = pneg %p140
        $region30: #{tpu_custom_call.1} parent=15 // pred_check_branch
          %226 = sbr.rel (%p224) target = $region32
        $region31: #{tpu_custom_call.1} parent=15 // pred_region
          %p227 = scmp.lt.s32.totalorder %s20, 1
          %s228 = scalar_select %p227, %s20, 1
          %p229 = scmp.lt.s32.totalorder %s21, 0
          %s230 = scalar_select %p229, %s21, 0
          %p231 = scmp.lt.s32.totalorder %s22, 0
          %s232 = scalar_select %p231, %s22, 0
          %s233 = sadd.s32 %s232, %s230
          %s234 = sadd.s32 %s233, %s228
          %s235 = smul.addr %s234, 2
          %s236 = scalar_lea.vmem %s3, %s235
        $region32: #{tpu_custom_call.1} parent=15 // pred_fallthru
          _
      $region16: #{tpu_custom_call.1} parent=5 // pred_fallthru
        _
      %p237 = scmp.le.s32.totalorder 1, %s13
      %p238 = scmp.lt.s32.totalorder %s13, 3
      %p239 = pnand %p237, %p238
      %p240 = pneg %p239
      // Predicated region
      $region33: #{tpu_custom_call.1} parent=5 // pred_check
        _
      $region34: #{tpu_custom_call.1} parent=5 // pred_check_branch
        %242 = sbr.rel (%p239) target = $region36
      $region35: #{tpu_custom_call.1} parent=5 // pred_region
        %s243 = ssub.s32 %s13, 1
        %p244 = scmp.lt.s32.totalorder %s23, 1
        %s245 = scalar_select %p244, %s23, 1
        %p246 = scmp.lt.s32.totalorder %s24, 0
        %s247 = scalar_select %p246, %s24, 0
        %s248 = sadd.s32 %s247, %s245
        %s249 = smul.addr %s248, 8
        %s250 = scalar_lea.vmem %s0, %s249
        %p251 = pneg %p60
        %p252 = pneg %p57
        %p253 = scmp.lt.s32.totalorder %s23, 1
        %s254 = scalar_select %p253, %s23, 1
        %p255 = scmp.lt.s32.totalorder %s25, 0
        %s256 = scalar_select %p255, %s25, 0
        %s257 = smul.addr %s254, 4
        %s258 = sadd.s32 %s256, %s257
        %s259 = smul.addr %s258, 8
        %s260 = scalar_lea.vmem %s1, %s259
        %p261 = pneg %p88
        %p262 = pneg %p85
        %p263 = scmp.lt.s32.totalorder %s23, 1
        %s264 = scalar_select %p263, %s23, 1
        %p265 = scmp.lt.s32.totalorder %s25, 0
        %s266 = scalar_select %p265, %s25, 0
        %s267 = sadd.s32 %s266, %s264
        %s268 = smul.addr %s267, 8
        %s269 = scalar_lea.vmem %s2, %s268
        %p270 = pneg %p116
        %p271 = pneg %p113
        %p272 = scmp.lt.s32.totalorder %s23, 1
        %s273 = scalar_select %p272, %s23, 1
        %p274 = scmp.lt.s32.totalorder %s24, 0
        %s275 = scalar_select %p274, %s24, 0
        %p276 = scmp.lt.s32.totalorder %s25, 0
        %s277 = scalar_select %p276, %s25, 0
        %s278 = sadd.s32 %s277, %s275
        %s279 = sadd.s32 %s278, %s273
        %s280 = smul.addr %s279, 2
        %s281 = scalar_lea.vmem %s3, %s280
        %p282 = pneg %p146
        %p283 = pneg %p143
        %p284 = pneg %p174
        %p285 = pneg %p171
        %s286 = sand.u32 %s161, 1
        %s287 = scalar_lea.sflag [#allocation6], %s286
        %s288 = sand.u32 %s161, 1
        %s289 = smul.addr %s288, 8
        %s290 = scalar_lea.vmem [#allocation5], %s289
        %p291 = scmp.lt.s32.totalorder %s23, 1
        %s292 = scalar_select %p291, %s23, 1
        %p293 = scmp.lt.s32.totalorder %s24, 0
        %s294 = scalar_select %p293, %s24, 0
        %s295 = sadd.s32 %s294, %s292
        %s296 = smul.addr %s295, 8
        %s297 = scalar_lea.vmem %s0, %s296
        %p298 = scmp.lt.s32.totalorder %s23, 1
        %s299 = scalar_select %p298, %s23, 1
        %p300 = scmp.lt.s32.totalorder %s25, 0
        %s301 = scalar_select %p300, %s25, 0
        %s302 = smul.addr %s299, 4
        %s303 = sadd.s32 %s301, %s302
        %s304 = smul.addr %s303, 8
        %s305 = scalar_lea.vmem %s1, %s304
        %p306 = scmp.lt.s32.totalorder %s23, 1
        %s307 = scalar_select %p306, %s23, 1
        %p308 = scmp.lt.s32.totalorder %s25, 0
        %s309 = scalar_select %p308, %s25, 0
        %s310 = sadd.s32 %s309, %s307
        %s311 = smul.addr %s310, 8
        %s312 = scalar_lea.vmem %s2, %s311
        %p313 = scmp.lt.s32.totalorder %s23, 1
        %s314 = scalar_select %p313, %s23, 1
        %p315 = scmp.lt.s32.totalorder %s24, 0
        %s316 = scalar_select %p315, %s24, 0
        %p317 = scmp.lt.s32.totalorder %s25, 0
        %s318 = scalar_select %p317, %s25, 0
        %s319 = sadd.s32 %s318, %s316
        %s320 = sadd.s32 %s319, %s314
        %s321 = smul.addr %s320, 2
        %s322 = scalar_lea.vmem %s3, %s321
        %p325 = scmp.eq.s32.totalorder %s25, 0
        // Predicated region
        $region37: #{tpu_custom_call.1} parent=35 // pred_check
          %p326 = pneg %p325
        $region38: #{tpu_custom_call.1} parent=35 // pred_check_branch
          %328 = sbr.rel (%p326) target = $region40
        $region39: #{tpu_custom_call.1} parent=35 // pred_region
          %vm329 = vcmask 7168
          %330 = vst.msk [vmem:[#allocation2] sm:$0xff] %vm329, -inf
          %331 = vst.msk [vmem:[#allocation3] sm:$0xff] %vm329, 0.0
          %vm332 = vcmask 261120
          %333 = vst.msk [vmem:[#allocation4] sm:$0xff] %vm332, 0.0
        $region40: #{tpu_custom_call.1} parent=35 // pred_fallthru
          _
        %v334 = vld [vmem:[%s297] sm:$0xff]
        %v335 = vld [vmem:[%s305] sm:$0xff]
        %v336 = vld [vmem:[%s305 + $0x8] sm:$0xff]
        %v337 = vld [vmem:[%s305 + $0x10] sm:$0xff]
        %v338 = vld [vmem:[%s305 + $0x18] sm:$0xff]
        %vm339 = vcmask 261120
        %v341 = vsel %vm339, %v334, 0
        %343 = vmatpush.msra.mxu0 0.0
        %344 = vmatpush.msra.mxu0 0.0
        %345 = vmatpush.msra.mxu0 0.0
        %346 = vmatpush.msra.mxu0 0.0
        %347 = vmatpush.msra.mxu0 0.0
        %348 = vmatpush.msra.mxu0 0.0
        %349 = vmatpush.msra.mxu0 0.0
        %350 = vmatpush.msra.mxu0 0.0
        %351 = vmatpush.msra.mxu0 0.0
        %352 = vmatpush.msra.mxu0 0.0
        %353 = vmatpush.msra.mxu0 0.0
        %354 = vmatpush.msra.mxu0 0.0
        %355 = vmatpush.msra.mxu0 %v338
        %356 = vmatpush.msra.mxu0 %v337
        %357 = vmatpush.msra.mxu0 %v336
        %358 = vmatpush.msra.mxu0 %v335
        %359 = vmatmul.f32.gmra.mxu0 %v341
        %v360 = vpop.f32.mrf.mxu0
        %v361 = vadd.f32 0.0, %v360
        %362 = vdwg.mxu0
        %v363 = vmul.f32 %v361, 0.17677669
        %v364 = vld [vmem:[%s322] sm:$0x3]
        %vm365 = vnez %v364
        %v366 = vsel %vm365, 16843009, 0
        %v367 = vunpack.c.0.s8 %v366
        %vm368 = vcmp.ne.s32.totalorder %v367, 0
        %v369 = vsel %vm368, -1e+09, %v363
        %v370 = vld [vmem:[#allocation2] sm:$0xff]
        %vm371 = vcmask 64512
        %v372 = vsel %vm371, %v369, -inf
        %373 = vmax.xlane.f32.xlu0 %v372
        %v374 = vpop.xlane.xlu0 %373
        %v375 = vmax.f32 %v370, %v374
        %v376 = vsub.f32 %v370, %v375
        %v377 = vmul.f32 %v376, 1.442695
        %v378 = vpow.pop %v377
        %380 = vset.pattern.permute.xlu0 0
        %381 = vperm.xlu0 %380, %v375
        %v382 = vpop.permute.xlu0 %381
        %v384 = vsub.f32 %v369, %v382
        %v385 = vmul.f32 %v384, 1.442695
        %v386 = vpow.pop %v385
        %v387 = vld [vmem:[#allocation3] sm:$0xff]
        %v388 = vmul.f32 %v378, %v387
        %v389 = vsel %vm371, %v386, 0.0
        %390 = vadd.xlane.f32.xlu0 %v389
        %v391 = vpop.xlane.xlu0 %390
        %v392 = vadd.f32 %v388, %v391
        %vm393 = vcmask 7168
        %394 = vst.msk [vmem:[#allocation3] sm:$0xff] %vm393, %v392
        %v395 = vld [vmem:[#allocation4] sm:$0xff]
        %397 = vset.pattern.permute.xlu0 0
        %398 = vperm.xlu0 %397, %v378
        %v399 = vpop.permute.xlu0 %398
        %v401 = vmul.f32 %v399, %v395
        %v402 = vld [vmem:[%s312] sm:$0xff]
        %v404 = vsel %vm371, %v386, 0
        %406 = vmatpush.msra.mxu0 0.0
        %407 = vmatpush.msra.mxu0 0.0
        %408 = vmatpush.msra.mxu0 0.0
        %409 = vmatpush.msra.mxu0 0.0
        %410 = vmatpush.msra.mxu0 0.0
        %411 = vmatpush.msra.mxu0 0.0
        %412 = vmatpush.msra.mxu0 0.0
        %413 = vmatpush.msra.mxu0 0.0
        %414 = vmatpush.msra.mxu0 0.0
        %415 = vmatpush.msra.mxu0 0.0
        %416 = vmatpush.msra.mxu0 0.0
        %417 = vmatpush.msra.mxu0 0.0
        %418 = vmatpush.msra.mxu0 0.0
        %419 = vmatpush.msra.mxu0 0.0
        %420 = vmatpush.msra.mxu0 0.0
        %421 = vmatpush.msra.mxu0 %v402
        %422 = vmatmul.f32.gmra.mxu0 %v404
        %v423 = vpop.f32.mrf.mxu0
        %v424 = vadd.f32 0.0, %v423
        %425 = vdwg.mxu0
        %v426 = vadd.f32 %v401, %v424
        %427 = vst.msk [vmem:[#allocation4] sm:$0xff] %vm339, %v426
        %428 = vst.msk [vmem:[#allocation2] sm:$0xff] %vm393, %v375
        // Predicated region
        $region41: #{tpu_custom_call.1} parent=35 // pred_check
          %p429 = pneg %p325
        $region42: #{tpu_custom_call.1} parent=35 // pred_check_branch
          %431 = sbr.rel (%p429) target = $region44
        $region43: #{tpu_custom_call.1} parent=35 // pred_region
          %v432 = vld [vmem:[#allocation3] sm:$0xff]
          %v433 = vrcp.pop %v432
          %v434 = vld [vmem:[#allocation4] sm:$0xff]
          %436 = vset.pattern.permute.xlu0 0
          %437 = vperm.xlu0 %436, %v433
          %v438 = vpop.permute.xlu0 %437
          %v440 = vmul.f32 %v434, %v438
          %441 = vst.msk [vmem:[%s290] sm:$0xff] %vm339, %v440
        $region44: #{tpu_custom_call.1} parent=35 // pred_fallthru
          _
        %s442 = sand.u32 %s161, 1
        %s443 = scalar_lea.sflag [#allocation6], %s442
        %s444 = sand.u32 %s161, 1
        %s445 = smul.addr %s444, 8
        %s446 = scalar_lea.vmem [#allocation5], %s445
        // Predicated region
        $region45: #{tpu_custom_call.1} parent=35 // pred_check
          %p447 = pneg %p171
        $region46: #{tpu_custom_call.1} parent=35 // pred_check_branch
          %449 = sbr.rel (%p447) target = $region48
        $region47: #{tpu_custom_call.1} parent=35 // pred_region
          %451 = vsyncadd %s443, 0
          %s452 = sadd.s32 %s24, %s23
          %s453 = smul.addr %s452, 8
          %s454 = scalar_lea.hbm %s4, %s453
          %s456 = sshll.u32 %s446, 4
          %s457 = int_to_ptr.vmem [resolvable:$true] %s456
          %s458 = sshll.u32 %s454, 4
          %s459 = int_to_ptr.hbm [resolvable:$true] %s458
          %461 = dma.vmem_to_hbm [thread:$0]  %s457, 128, %s459, %s443
        $region48: #{tpu_custom_call.1} parent=35 // pred_fallthru
          _
      $region36: #{tpu_custom_call.1} parent=5 // pred_fallthru
        _
      %p462 = scmp.le.s32.totalorder 2, %s13
      // Predicated region
      $region49: #{tpu_custom_call.1} parent=5 // pred_check
        %p463 = pneg %p462
      $region50: #{tpu_custom_call.1} parent=5 // pred_check_branch
        %465 = sbr.rel (%p463) target = $region52
      $region51: #{tpu_custom_call.1} parent=5 // pred_region
        %s466 = ssub.s32 %s13, 2
        // Predicated region
        $region53: #{tpu_custom_call.1} parent=51 // pred_check
          %p467 = pneg %p177
        $region54: #{tpu_custom_call.1} parent=51 // pred_check_branch
          %469 = sbr.rel (%p467) target = $region56
        $region55: #{tpu_custom_call.1} parent=51 // pred_region
          %s470 = sand.u32 %s162, 1
          %s471 = scalar_lea.sflag [#allocation6], %s470
          %s472 = sand.u32 %s162, 1
          %s473 = smul.addr %s472, 8
          %s474 = scalar_lea.vmem [#allocation5], %s473
          %476 = dma.done %s471, 128
        $region56: #{tpu_custom_call.1} parent=51 // pred_fallthru
          _
      $region52: #{tpu_custom_call.1} parent=5 // pred_fallthru
        _
    $region6: #{tpu_custom_call.1} parent=1 // loop_footer
      %s17 = sadd.s32 1, %s13
    $region7: #{tpu_custom_call.1} parent=1 // loop_footer_branch
      %12 = sbr.rel target = $region3
    $region8: #{tpu_custom_call.1} parent=1 // loop_exit
      _
    %477 = vsyncpa [#allocation6], 1
    %s478 = scalar_lea.sflag [#allocation6], 1
    %479 = vsyncpa %s478, 1

</llo_original>
